<compile_context>
chip_gen: v7x
topology: tpu7x:2x2x1
jax: 0.10.0
libtpu: 0.0.40
codegen_flags: <defaults>
</compile_context>

<pallas_src>
import math

import jax
import jax.numpy as jnp
from jax.experimental import pallas as pl
from jax.experimental.pallas import tpu as pltpu

_MIN_GRID_STEPS = 8                # keep both v7x TensorCores + the SW pipeline fed
_SINGLE_BLOCK_BYTES = 1 << 20      # <= 1 MiB (coalesced) input -> grid-less single-block path


def _sublane_granularity(dtype):
    """Minimum legal sublane tile: 8 rows for 4-byte, 16 for 2-byte, 32 for 1-byte dtypes."""
    return max(8, 32 // jnp.dtype(dtype).itemsize)


def _vmem_budgets():
    """(block_budget_bytes, vmem_limit_bytes, max_lane_tile), generation-aware."""
    vmem_bytes = 64 * 1024 * 1024                       # conservative default: v7x (64 MiB/core)
    try:
        vmem_bytes = int(pltpu.get_tpu_info().vmem_capacity_bytes)
    except Exception:                                   # older jax / info unavailable -> stay safe
        pass
    if vmem_bytes >= 100 * 1024 * 1024:                 # v5e / v6e: 128 MiB per core
        return 16 * 1024 * 1024, 64 * 1024 * 1024, 2048
    return 8 * 1024 * 1024, 32 * 1024 * 1024, 1024      # v7x: 64 MiB per core


def _coalesce(shape, dims):
    """Merge input axes that remain adjacent and in-order under the permutation."""
    groups = [[dims[0]]]                                # groups of input axes, in OUTPUT order
    for d in dims[1:]:
        if d == groups[-1][-1] + 1:
            groups[-1].append(d)
        else:
            groups.append([d])
    in_order = sorted(groups, key=lambda g: g[0])
    in_shape_c = tuple(math.prod(shape[a] for a in g) for g in in_order)
    gidx = {g[0]: i for i, g in enumerate(in_order)}
    dims_c = tuple(gidx[g[0]] for g in groups)
    return in_shape_c, dims_c


# ---------------------------------------------------------------------------
# Tiny-tensor path: whole (coalesced) array in a single VMEM block, no grid.
# ---------------------------------------------------------------------------
def _single_block_permute(x_c, dims_c):
    out_shape = tuple(x_c.shape[d] for d in dims_c)

    def kernel(x_ref, o_ref):
        o_ref[...] = jnp.transpose(x_ref[...], dims_c)

    return pl.pallas_call(
        kernel,
        out_shape=jax.ShapeDtypeStruct(out_shape, x_c.dtype),
    )(x_c)


# ---------------------------------------------------------------------------
# Hot path: tiled batched 2-D transpose  out[b, l, r] = x[b, r, l].
# ---------------------------------------------------------------------------
def _transpose_tile_kernel(x_ref, o_ref):
    # Block: x (rt, lt) -> o (lt, rt).  Unit batch dim is squeezed via `None` in the BlockSpecs.
    # TODO(synk): for rt < 128 an in-kernel (lt, rt) -> (lt*rt,) flatten would also make the
    # VMEM side of the store DMA lane-dense; Mosaic reshape of a non-128 minor dim is not
    # reliably supported, so we rely on rt == R giving a contiguous HBM writeback instead.
    o_ref[...] = x_ref[...].T


def _batched_transpose(xb, block_budget, vmem_limit, max_lane):
    B, R, L = xb.shape
    itemsize = xb.dtype.itemsize
    # in + out blocks, each double-buffered -> 4x one block per step.
    budget_elems = max(128 * 128, block_budget // (4 * itemsize))

    if R * 128 <= budget_elems:
        # Preferred: rt == R (full output minor).  Each output block writes back as ONE
        # contiguous HBM DMA and the (8,128) rule is satisfied via "full extent".
        rt = R
        lt_cap = min(max_lane, (budget_elems // R // 128) * 128)
        lt = L if L <= lt_cap else lt_cap
    else:
        # R itself is huge: tile both axes with lane-dense 128-multiples (unmasked vst).
        lt = L if L <= 512 else 512
        rt_cap = max(128, min(max_lane, (budget_elems // lt // 128) * 128))
        rt = R if R <= rt_cap else rt_cap

    # Guarantee enough grid steps for the pipeline / both v7x cores; extra steps cost ~0.35us.
    def _steps(rt_, lt_):
        return B * -(-R // rt_) * -(-L // lt_)

    while _steps(rt, lt) < _MIN_GRID_STEPS:
        if lt > 128:
            lt = max(128, ((lt // 2) // 128) * 128)     # stays a 128-multiple -> legal tile
            continue
        if rt > 128:
            rt = max(128, ((rt // 2) // 128) * 128)
            continue
        break

    grid = (B, pl.cdiv(R, rt), pl.cdiv(L, lt))
    return pl.pallas_call(
        _transpose_tile_kernel,
        out_shape=jax.ShapeDtypeStruct((B, L, R), xb.dtype),
        grid=grid,
        in_specs=[pl.BlockSpec((None, rt, lt), lambda b, ri, lj: (b, ri, lj))],
        out_specs=pl.BlockSpec((None, lt, rt), lambda b, ri, lj: (b, lj, ri)),
        compiler_params=pltpu.CompilerParams(
            dimension_semantics=("parallel", "parallel", "parallel"),
            vmem_limit_bytes=vmem_limit,
        ),
        cost_estimate=pl.CostEstimate(
            flops=0, transcendentals=0, bytes_accessed=2 * xb.size * itemsize),
    )(xb)


# ---------------------------------------------------------------------------
# Generic path: arbitrary coalesced permutation with budget-checked, layout-legal tiles.
# ---------------------------------------------------------------------------
def _generic_permute(x_c, dims_c, block_budget, vmem_limit):
    m = len(dims_c)
    in_shape = x_c.shape
    out_shape = tuple(in_shape[d] for d in dims_c)
    itemsize = x_c.dtype.itemsize
    gran = _sublane_granularity(x_c.dtype)

    lane_axes = {m - 1, dims_c[-1]}                  # minor of input and of output: 128-mult/full
    sub_axes = {m - 2, dims_c[-2]} - lane_axes       # second-minor on either side: sublane/full

    tiles = [1] * m
    for a in lane_axes:
        tiles[a] = in_shape[a] if in_shape[a] <= 256 else 256
    for a in sub_axes:
        tiles[a] = in_shape[a] if in_shape[a] <= 128 else 128

    budget_elems = max(8 * 128, block_budget // (4 * itemsize))

    def _shrink(a):
        lo = 128 if a in lane_axes else gran
        t = tiles[a]
        if t <= lo:
            return False
        tiles[a] = max(lo, ((t // 2) // lo) * lo)
        return True

    while math.prod(tiles) > budget_elems:
        for a in sorted(lane_axes | sub_axes, key=lambda ax: -tiles[ax]):
            if _shrink(a):
                break
        else:
            break                                    # cannot shrink further; vmem_limit still set

    # Block >1 element along unconstrained leading axes so long axes don't turn into
    # per-element grid steps, as long as the budget allows it.
    for a in range(m):
        if a in lane_axes or a in sub_axes:
            continue
        while tiles[a] < in_shape[a] and math.prod(tiles) * 2 <= budget_elems:
            tiles[a] = min(in_shape[a], tiles[a] * 2)

    in_block = tuple(tiles)
    out_block = tuple(tiles[d] for d in dims_c)
    grid = tuple(pl.cdiv(out_shape[k], out_block[k]) for k in range(m))

    def in_map(*g):
        idx = [0] * m
        for k in range(m):
            idx[dims_c[k]] = g[k]
        return tuple(idx)

    def out_map(*g):
        return tuple(g)

    def kernel(x_ref, o_ref):
        o_ref[...] = jnp.transpose(x_ref[...], dims_c)

    return pl.pallas_call(
        kernel,
        out_shape=jax.ShapeDtypeStruct(out_shape, x_c.dtype),
        grid=grid,
        in_specs=[pl.BlockSpec(in_block, in_map)],
        out_specs=pl.BlockSpec(out_block, out_map),
        compiler_params=pltpu.CompilerParams(
            dimension_semantics=("parallel",) * m,
            vmem_limit_bytes=vmem_limit,
        ),
        cost_estimate=pl.CostEstimate(
            flops=0, transcendentals=0, bytes_accessed=2 * x_c.size * itemsize),
    )(x_c)


# ---------------------------------------------------------------------------
# Dispatch / wrapper.
# ---------------------------------------------------------------------------
def pallas_permute(x, dims):
    """Equivalent of torch.permute(x, dims), computed with Pallas TPU kernels."""
    dims = tuple(int(d) for d in dims)
    assert sorted(dims) == list(range(x.ndim)), "dims must be a permutation of the axes"
    out_shape = tuple(x.shape[d] for d in dims)

    if dims == tuple(range(x.ndim)):
        return x                                        # identity permutation

    in_shape_c, dims_c = _coalesce(x.shape, dims)
    m = len(dims_c)
    if m == 1:
        return x.reshape(out_shape)
    x_c = x.reshape(in_shape_c)

    block_budget, vmem_limit, max_lane = _vmem_budgets()

    if x_c.size * x_c.dtype.itemsize <= _SINGLE_BLOCK_BYTES:
        out_c = _single_block_permute(x_c, dims_c)
    elif dims_c == tuple(range(m - 2)) + (m - 1, m - 2):
        # Leading (batch) axes untouched, fat trailing pair swapped -> batched 2-D transpose.
        B = math.prod(in_shape_c[:m - 2]) if m > 2 else 1
        R, L = in_shape_c[-2], in_shape_c[-1]
        out_c = _batched_transpose(x_c.reshape(B, R, L), block_budget, vmem_limit, max_lane)
    else:
        out_c = _generic_permute(x_c, dims_c, block_budget, vmem_limit)

    # The final reshape back to the true output shape is free (same memory order).
    return out_c.reshape(out_shape)


class Permute:
    """Pallas counterpart of the PyTorch nn.Module."""

    def __init__(self, dims):
        self.dims = tuple(int(d) for d in dims)

    def __call__(self, x):
        return pallas_permute(x, self.dims)


if __name__ == "__main__":
    key = jax.random.PRNGKey(0)
    # NCHW input: batch=2, channels=4, spatial=16x16; permute to NHWC.
    x = jax.random.normal(key, (2, 4, 16, 16), dtype=jnp.float32)
    dims = (0, 2, 3, 1)

    mod = Permute(dims)
    out = jax.block_until_ready(mod(x))

    ref = jnp.transpose(x, dims)
    assert out.shape == ref.shape, (out.shape, ref.shape)
    assert out.dtype == ref.dtype
    assert bool(jnp.array_equal(out, ref))

    print("KERNEL_OK")
</pallas_src>

<mosaic_0001>
module attributes {stable_mosaic.version = 11 : i64} {
  func.func @kernel(%arg0: memref<2x4x256xf32, #tpu.memory_space<vmem>>, %arg1: memref<2x256x4xf32, #tpu.memory_space<vmem>>) attributes {dimension_semantics = [], scalar_prefetch = 0 : i64, scratch_operands = 0 : i64, tpu.core_type = #tpu.core_type<tc>} {
    %c0 = arith.constant 0 : index
    %c0_0 = arith.constant 0 : index
    %c0_1 = arith.constant 0 : index
    %0 = vector.load %arg0[%c0, %c0_0, %c0_1] : memref<2x4x256xf32, #tpu.memory_space<vmem>>, vector<2x4x256xf32>
    %1 = tpu.transpose %0, [0, 2, 1] : vector<2x4x256xf32> -> vector<2x256x4xf32>
    %c0_2 = arith.constant 0 : index
    %c0_3 = arith.constant 0 : index
    %c0_4 = arith.constant 0 : index
    %2 = vector.load %arg1[%c0_2, %c0_3, %c0_4] : memref<2x256x4xf32, #tpu.memory_space<vmem>>, vector<2x256x4xf32>
    tpu.vector_store %arg1[%c0_2, %c0_3, %c0_4], %1 {strides = array<i32>} : memref<2x256x4xf32, #tpu.memory_space<vmem>>, vector<2x256x4xf32>,
    return
  }
}

</mosaic_0001>

<llo_original>
// kernel: tpu_custom_call.1
$region0: #{tpu_custom_call.1}
  #allocation0 [shape = 'u32[]', space=smem, size = 0x4, offset = 0x4, fixed_abs, tag = 'smem constant byte address 0x4 - core index']
  #allocation1 [shape = 'u32[144,128]{1,0:T(1,128)}', space=vmem, size = 0x12000, scoped, tag = 'internal scratch']
  %s0 = inlined_call_operand.hbm [shape: f32[2,4,256], index: 0, kind: input, shape index: {}]
  %s1 = inlined_call_operand.vmem [shape: f32[2,256,4], index: 1, kind: output, shape index: {}]
  %s2 = sld [smem:[#allocation0]]
  $region18: #{tpu_custom_call.1} parent=0
    _
  %s4 = ssub.s32 1, %s2
  %s5 = scalar_select 0, %s4, %s2
  $region1: #{tpu_custom_call.1} parent=0
    #allocation2 [shape = 'u8[8192]{0}', space=vmem, size = 0x2000, scoped, tag = 'input window, operand 0, single buffered']
    #allocation3 [shape = 's32[1]{0}', space=sflag, size = 0x4, scoped, tag = 'scoped memory for tpu_custom_call.1']
    %6 = vsyncpa [#allocation3], 0
    // Predicated region
    $region2: #{tpu_custom_call.1} parent=1 // pred_check
      _
    $region3: #{tpu_custom_call.1} parent=1 // pred_check_branch
      %8 = sbr.rel (0) target = $region5
    $region4: #{tpu_custom_call.1} parent=1 // pred_region
      %s10 = ssub.s32 256, 256
      %11 = vsyncadd [#allocation3], %s10
      %s12 = sshll.u32 [#allocation2], 4
      %s13 = int_to_ptr.vmem [resolvable:$true] %s12
      %18 = dma.hbm_to_vmem [thread:$0]  %s0, 256, %s13, [#allocation3], 128, 128, 8
    $region5: #{tpu_custom_call.1} parent=1 // pred_fallthru
      _
    // Predicated region
    $region6: #{tpu_custom_call.1} parent=1 // pred_check
      _
    $region7: #{tpu_custom_call.1} parent=1 // pred_check_branch
      %20 = sbr.rel (0) target = $region9
    $region8: #{tpu_custom_call.1} parent=1 // pred_region
      %21 = dma.done [#allocation3], 256
    $region9: #{tpu_custom_call.1} parent=1 // pred_fallthru
      _
    %v22 = vld [vmem:[#allocation2] sm:$0xff]
    %v23 = vld [vmem:[#allocation2 + $0x8] sm:$0xff]
    %v26 = vcombine.high %v22, %v22
    %v27 = vcombine.high %v23, %v23
    %30 = vxpose.xlu0.b32.start [1/16] %v22, 128
    %31 = vxpose.xlu0.b32.cont [2/16] 0.0, 128
    %32 = vxpose.xlu0.b32.cont [3/16] 0.0, 128
    %33 = vxpose.xlu0.b32.cont [4/16] 0.0, 128
    %34 = vxpose.xlu0.b32.cont [5/16] 0.0, 128
    %35 = vxpose.xlu0.b32.cont [6/16] 0.0, 128
    %36 = vxpose.xlu0.b32.cont [7/16] 0.0, 128
    %37 = vxpose.xlu0.b32.cont [8/16] 0.0, 128
    %38 = vxpose.xlu0.b32.cont [9/16] 0.0, 128
    %39 = vxpose.xlu0.b32.cont [10/16] 0.0, 128
    %40 = vxpose.xlu0.b32.cont [11/16] 0.0, 128
    %41 = vxpose.xlu0.b32.cont [12/16] 0.0, 128
    %42 = vxpose.xlu0.b32.cont [13/16] 0.0, 128
    %43 = vxpose.xlu0.b32.cont [14/16] 0.0, 128
    %44 = vxpose.xlu0.b32.cont [15/16] 0.0, 128
    %45 = vxpose.xlu0.b32.end [16/16] 0.0, 128
    %v46 = vpop.trf.xlu0
    %v47 = vpop.trf.xlu0
    %v48 = vpop.trf.xlu0
    %v49 = vpop.trf.xlu0
    %v50 = vpop.trf.xlu0
    %v51 = vpop.trf.xlu0
    %v52 = vpop.trf.xlu0
    %v53 = vpop.trf.xlu0
    %v54 = vpop.trf.xlu0
    %v55 = vpop.trf.xlu0
    %v56 = vpop.trf.xlu0
    %v57 = vpop.trf.xlu0
    %v58 = vpop.trf.xlu0
    %v59 = vpop.trf.xlu0
    %v60 = vpop.trf.xlu0
    %v61 = vpop.trf.xlu0
    %62 = vxpose.xlu0.b32.start [1/16] %v26, 128
    %63 = vxpose.xlu0.b32.cont [2/16] 0.0, 128
    %64 = vxpose.xlu0.b32.cont [3/16] 0.0, 128
    %65 = vxpose.xlu0.b32.cont [4/16] 0.0, 128
    %66 = vxpose.xlu0.b32.cont [5/16] 0.0, 128
    %67 = vxpose.xlu0.b32.cont [6/16] 0.0, 128
    %68 = vxpose.xlu0.b32.cont [7/16] 0.0, 128
    %69 = vxpose.xlu0.b32.cont [8/16] 0.0, 128
    %70 = vxpose.xlu0.b32.cont [9/16] 0.0, 128
    %71 = vxpose.xlu0.b32.cont [10/16] 0.0, 128
    %72 = vxpose.xlu0.b32.cont [11/16] 0.0, 128
    %73 = vxpose.xlu0.b32.cont [12/16] 0.0, 128
    %74 = vxpose.xlu0.b32.cont [13/16] 0.0, 128
    %75 = vxpose.xlu0.b32.cont [14/16] 0.0, 128
    %76 = vxpose.xlu0.b32.cont [15/16] 0.0, 128
    %77 = vxpose.xlu0.b32.end [16/16] 0.0, 128
    %v78 = vpop.trf.xlu0
    %v79 = vpop.trf.xlu0
    %v80 = vpop.trf.xlu0
    %v81 = vpop.trf.xlu0
    %v82 = vpop.trf.xlu0
    %v83 = vpop.trf.xlu0
    %v84 = vpop.trf.xlu0
    %v85 = vpop.trf.xlu0
    %v86 = vpop.trf.xlu0
    %v87 = vpop.trf.xlu0
    %v88 = vpop.trf.xlu0
    %v89 = vpop.trf.xlu0
    %v90 = vpop.trf.xlu0
    %v91 = vpop.trf.xlu0
    %v92 = vpop.trf.xlu0
    %v93 = vpop.trf.xlu0
    %94 = vxpose.xlu0.b32.start [1/16] %v23, 128
    %95 = vxpose.xlu0.b32.cont [2/16] 0.0, 128
    %96 = vxpose.xlu0.b32.cont [3/16] 0.0, 128
    %97 = vxpose.xlu0.b32.cont [4/16] 0.0, 128
    %98 = vxpose.xlu0.b32.cont [5/16] 0.0, 128
    %99 = vxpose.xlu0.b32.cont [6/16] 0.0, 128
    %100 = vxpose.xlu0.b32.cont [7/16] 0.0, 128
    %101 = vxpose.xlu0.b32.cont [8/16] 0.0, 128
    %102 = vxpose.xlu0.b32.cont [9/16] 0.0, 128
    %103 = vxpose.xlu0.b32.cont [10/16] 0.0, 128
    %104 = vxpose.xlu0.b32.cont [11/16] 0.0, 128
    %105 = vxpose.xlu0.b32.cont [12/16] 0.0, 128
    %106 = vxpose.xlu0.b32.cont [13/16] 0.0, 128
    %107 = vxpose.xlu0.b32.cont [14/16] 0.0, 128
    %108 = vxpose.xlu0.b32.cont [15/16] 0.0, 128
    %109 = vxpose.xlu0.b32.end [16/16] 0.0, 128
    %v110 = vpop.trf.xlu0
    %v111 = vpop.trf.xlu0
    %v112 = vpop.trf.xlu0
    %v113 = vpop.trf.xlu0
    %v114 = vpop.trf.xlu0
    %v115 = vpop.trf.xlu0
    %v116 = vpop.trf.xlu0
    %v117 = vpop.trf.xlu0
    %v118 = vpop.trf.xlu0
    %v119 = vpop.trf.xlu0
    %v120 = vpop.trf.xlu0
    %v121 = vpop.trf.xlu0
    %v122 = vpop.trf.xlu0
    %v123 = vpop.trf.xlu0
    %v124 = vpop.trf.xlu0
    %v125 = vpop.trf.xlu0
    %126 = vxpose.xlu0.b32.start [1/16] %v27, 128
    %127 = vxpose.xlu0.b32.cont [2/16] 0.0, 128
    %128 = vxpose.xlu0.b32.cont [3/16] 0.0, 128
    %129 = vxpose.xlu0.b32.cont [4/16] 0.0, 128
    %130 = vxpose.xlu0.b32.cont [5/16] 0.0, 128
    %131 = vxpose.xlu0.b32.cont [6/16] 0.0, 128
    %132 = vxpose.xlu0.b32.cont [7/16] 0.0, 128
    %133 = vxpose.xlu0.b32.cont [8/16] 0.0, 128
    %134 = vxpose.xlu0.b32.cont [9/16] 0.0, 128
    %135 = vxpose.xlu0.b32.cont [10/16] 0.0, 128
    %136 = vxpose.xlu0.b32.cont [11/16] 0.0, 128
    %137 = vxpose.xlu0.b32.cont [12/16] 0.0, 128
    %138 = vxpose.xlu0.b32.cont [13/16] 0.0, 128
    %139 = vxpose.xlu0.b32.cont [14/16] 0.0, 128
    %140 = vxpose.xlu0.b32.cont [15/16] 0.0, 128
    %141 = vxpose.xlu0.b32.end [16/16] 0.0, 128
    %v142 = vpop.trf.xlu0
    %v143 = vpop.trf.xlu0
    %v144 = vpop.trf.xlu0
    %v145 = vpop.trf.xlu0
    %v146 = vpop.trf.xlu0
    %v147 = vpop.trf.xlu0
    %v148 = vpop.trf.xlu0
    %v149 = vpop.trf.xlu0
    %v150 = vpop.trf.xlu0
    %v151 = vpop.trf.xlu0
    %v152 = vpop.trf.xlu0
    %v153 = vpop.trf.xlu0
    %v154 = vpop.trf.xlu0
    %v155 = vpop.trf.xlu0
    %v156 = vpop.trf.xlu0
    %v157 = vpop.trf.xlu0
    %vm158 = vcmask 31744
    %159 = vst.msk [vmem:[%s1] sm:$0xff] %vm158, %v46
    %160 = vst.msk [vmem:[%s1 + $0x8] sm:$0xff] %vm158, %v47
    %161 = vst.msk [vmem:[%s1 + $0x10] sm:$0xff] %vm158, %v48
    %162 = vst.msk [vmem:[%s1 + $0x18] sm:$0xff] %vm158, %v49
    %163 = vst.msk [vmem:[%s1 + $0x20] sm:$0xff] %vm158, %v50
    %164 = vst.msk [vmem:[%s1 + $0x28] sm:$0xff] %vm158, %v51
    %165 = vst.msk [vmem:[%s1 + $0x30] sm:$0xff] %vm158, %v52
    %166 = vst.msk [vmem:[%s1 + $0x38] sm:$0xff] %vm158, %v53
    %167 = vst.msk [vmem:[%s1 + $0x40] sm:$0xff] %vm158, %v54
    %168 = vst.msk [vmem:[%s1 + $0x48] sm:$0xff] %vm158, %v55
    %169 = vst.msk [vmem:[%s1 + $0x50] sm:$0xff] %vm158, %v56
    %170 = vst.msk [vmem:[%s1 + $0x58] sm:$0xff] %vm158, %v57
    %171 = vst.msk [vmem:[%s1 + $0x60] sm:$0xff] %vm158, %v58
    %172 = vst.msk [vmem:[%s1 + $0x68] sm:$0xff] %vm158, %v59
    %173 = vst.msk [vmem:[%s1 + $0x70] sm:$0xff] %vm158, %v60
    %174 = vst.msk [vmem:[%s1 + $0x78] sm:$0xff] %vm158, %v61
    %175 = vst.msk [vmem:[%s1 + $0x80] sm:$0xff] %vm158, %v78
    %176 = vst.msk [vmem:[%s1 + $0x88] sm:$0xff] %vm158, %v79
    %177 = vst.msk [vmem:[%s1 + $0x90] sm:$0xff] %vm158, %v80
    %178 = vst.msk [vmem:[%s1 + $0x98] sm:$0xff] %vm158, %v81
    %179 = vst.msk [vmem:[%s1 + $0xa0] sm:$0xff] %vm158, %v82
    %180 = vst.msk [vmem:[%s1 + $0xa8] sm:$0xff] %vm158, %v83
    %181 = vst.msk [vmem:[%s1 + $0xb0] sm:$0xff] %vm158, %v84
    %182 = vst.msk [vmem:[%s1 + $0xb8] sm:$0xff] %vm158, %v85
    %183 = vst.msk [vmem:[%s1 + $0xc0] sm:$0xff] %vm158, %v86
    %184 = vst.msk [vmem:[%s1 + $0xc8] sm:$0xff] %vm158, %v87
    %185 = vst.msk [vmem:[%s1 + $0xd0] sm:$0xff] %vm158, %v88
    %186 = vst.msk [vmem:[%s1 + $0xd8] sm:$0xff] %vm158, %v89
    %187 = vst.msk [vmem:[%s1 + $0xe0] sm:$0xff] %vm158, %v90
    %188 = vst.msk [vmem:[%s1 + $0xe8] sm:$0xff] %vm158, %v91
    %189 = vst.msk [vmem:[%s1 + $0xf0] sm:$0xff] %vm158, %v92
    %190 = vst.msk [vmem:[%s1 + $0xf8] sm:$0xff] %vm158, %v93
    %191 = vst.msk [vmem:[%s1 + $0x100] sm:$0xff] %vm158, %v110
    %192 = vst.msk [vmem:[%s1 + $0x108] sm:$0xff] %vm158, %v111
    %193 = vst.msk [vmem:[%s1 + $0x110] sm:$0xff] %vm158, %v112
    %194 = vst.msk [vmem:[%s1 + $0x118] sm:$0xff] %vm158, %v113
    %195 = vst.msk [vmem:[%s1 + $0x120] sm:$0xff] %vm158, %v114
    %196 = vst.msk [vmem:[%s1 + $0x128] sm:$0xff] %vm158, %v115
    %197 = vst.msk [vmem:[%s1 + $0x130] sm:$0xff] %vm158, %v116
    %198 = vst.msk [vmem:[%s1 + $0x138] sm:$0xff] %vm158, %v117
    %199 = vst.msk [vmem:[%s1 + $0x140] sm:$0xff] %vm158, %v118
    %200 = vst.msk [vmem:[%s1 + $0x148] sm:$0xff] %vm158, %v119
    %201 = vst.msk [vmem:[%s1 + $0x150] sm:$0xff] %vm158, %v120
    %202 = vst.msk [vmem:[%s1 + $0x158] sm:$0xff] %vm158, %v121
    %203 = vst.msk [vmem:[%s1 + $0x160] sm:$0xff] %vm158, %v122
    %204 = vst.msk [vmem:[%s1 + $0x168] sm:$0xff] %vm158, %v123
    %205 = vst.msk [vmem:[%s1 + $0x170] sm:$0xff] %vm158, %v124
    %206 = vst.msk [vmem:[%s1 + $0x178] sm:$0xff] %vm158, %v125
    %207 = vst.msk [vmem:[%s1 + $0x180] sm:$0xff] %vm158, %v142
    %208 = vst.msk [vmem:[%s1 + $0x188] sm:$0xff] %vm158, %v143
    %209 = vst.msk [vmem:[%s1 + $0x190] sm:$0xff] %vm158, %v144
    %210 = vst.msk [vmem:[%s1 + $0x198] sm:$0xff] %vm158, %v145
    %211 = vst.msk [vmem:[%s1 + $0x1a0] sm:$0xff] %vm158, %v146
    %212 = vst.msk [vmem:[%s1 + $0x1a8] sm:$0xff] %vm158, %v147
    %213 = vst.msk [vmem:[%s1 + $0x1b0] sm:$0xff] %vm158, %v148
    %214 = vst.msk [vmem:[%s1 + $0x1b8] sm:$0xff] %vm158, %v149
    %215 = vst.msk [vmem:[%s1 + $0x1c0] sm:$0xff] %vm158, %v150
    %216 = vst.msk [vmem:[%s1 + $0x1c8] sm:$0xff] %vm158, %v151
    %217 = vst.msk [vmem:[%s1 + $0x1d0] sm:$0xff] %vm158, %v152
    %218 = vst.msk [vmem:[%s1 + $0x1d8] sm:$0xff] %vm158, %v153
    %219 = vst.msk [vmem:[%s1 + $0x1e0] sm:$0xff] %vm158, %v154
    %220 = vst.msk [vmem:[%s1 + $0x1e8] sm:$0xff] %vm158, %v155
    %221 = vst.msk [vmem:[%s1 + $0x1f0] sm:$0xff] %vm158, %v156
    %222 = vst.msk [vmem:[%s1 + $0x1f8] sm:$0xff] %vm158, %v157
    // Predicated region
    $region10: #{tpu_custom_call.1} parent=1 // pred_check
      _
    $region11: #{tpu_custom_call.1} parent=1 // pred_check_branch
      %224 = sbr.rel (0) target = $region13
    $region12: #{tpu_custom_call.1} parent=1 // pred_region
      _
    $region13: #{tpu_custom_call.1} parent=1 // pred_fallthru
      _
    // Predicated region
    $region14: #{tpu_custom_call.1} parent=1 // pred_check
      _
    $region15: #{tpu_custom_call.1} parent=1 // pred_check_branch
      %226 = sbr.rel (0) target = $region17
    $region16: #{tpu_custom_call.1} parent=1 // pred_region
      _
    $region17: #{tpu_custom_call.1} parent=1 // pred_fallthru
      _
    %227 = vsyncpa [#allocation3], 1

</llo_original>
